<compile_context>
chip_gen: v6e
topology: v6e:2x2x1
jax: 0.10.0
libtpu: 0.0.40
codegen_flags: <defaults>
</compile_context>

<pallas_src>
import jax
import jax.numpy as jnp
from jax.experimental import pallas as pl
from jax.experimental.pallas import tpu as pltpu


def acn_kernel(x_ref, w1_ref, b1_ref, w2_ref, b2_ref, wh_ref, bh_ref, out_ref):
    # x: [TB, D_in] f32 (cast to bf16 here, on the VPU); weights bf16;
    # biases f32; out: [TB, actions+1] f32.
    x = x_ref[...].astype(jnp.bfloat16)

    # fcl1 + ReLU (f32 accumulate, cast back to bf16 for the next MXU pass)
    h1 = jnp.dot(x, w1_ref[...], preferred_element_type=jnp.float32) + b1_ref[...]
    h1 = jnp.maximum(h1, 0.0).astype(jnp.bfloat16)

    # fcl2 + ReLU
    h2 = jnp.dot(h1, w2_ref[...], preferred_element_type=jnp.float32) + b2_ref[...]
    h2 = jnp.maximum(h2, 0.0).astype(jnp.bfloat16)

    # fused policy+value head: narrow (actions+1)-wide output, written directly
    out_ref[...] = (jnp.dot(h2, wh_ref[...], preferred_element_type=jnp.float32)
                    + bh_ref[...]).astype(out_ref.dtype)


def _round_up(x, m):
    return ((x + m - 1) // m) * m


def acn_forward(state, params, *, tb=4096):
    """ACN forward. state: [B, D_in] float32. Returns (pi [B, A], v [B, 1]) in f32."""
    B, d_in = state.shape
    f1 = params["w1"].shape[1]
    f2 = params["w2"].shape[1]
    actions = params["w_pi"].shape[1]
    head_w = actions + 1  # fused pi/v head width (no lane padding)

    # --- fuse pi/v heads (narrow, un-padded) ---------------------------------
    w_head = jnp.concatenate([params["w_pi"], params["w_v"]], axis=1).astype(jnp.bfloat16)
    b_head = jnp.concatenate([params["b_pi"], params["b_v"]], axis=1).astype(jnp.float32)

    # --- bf16 weights, f32 biases ---------------------------------------------
    w1 = params["w1"].astype(jnp.bfloat16)
    w2 = params["w2"].astype(jnp.bfloat16)
    b1 = params["b1"].astype(jnp.float32)
    b2 = params["b2"].astype(jnp.float32)

    # --- batch tiling ----------------------------------------------------------
    # Multiple of 256 (full-height MXU slabs on v6e/v7x, fine on v5e), large by
    # default to amortize per-step overhead, and clamped so large batches split
    # into >= 2 grid steps (both v7x TensorCores get work).
    tb = max(256, _round_up(int(tb), 256))
    tb = min(tb, _round_up(pl.cdiv(B, 2), 256))
    grid = (pl.cdiv(B, tb),)

    # --- precise VMEM budget: 2x-buffered weights + tiles, plus intermediates --
    weight_bytes = 2 * (d_in * f1 + f1 * f2 + f2 * head_w) + 4 * (f1 + f2 + head_w)
    tile_bytes = tb * d_in * 4 + tb * head_w * 4                 # f32 in + f32 out tile
    inter_bytes = tb * (d_in * 2 + (f1 + f2) * 6 + head_w * 4)   # bf16 x, f32+bf16 h1/h2, f32 head
    vmem_limit = 2 * (weight_bytes + tile_bytes) + inter_bytes + (4 << 20)
    vmem_limit = int(min(max(vmem_limit, 16 << 20), 48 << 20))

    out = pl.pallas_call(
        acn_kernel,
        out_shape=jax.ShapeDtypeStruct((B, head_w), jnp.float32),
        grid_spec=pltpu.PrefetchScalarGridSpec(
            num_scalar_prefetch=0,
            grid=grid,
            in_specs=[
                pl.BlockSpec((tb, d_in), lambda i: (i, 0)),      # f32 state tile
                pl.BlockSpec((d_in, f1), lambda i: (0, 0)),      # w1 (resident)
                pl.BlockSpec((1, f1), lambda i: (0, 0)),         # b1
                pl.BlockSpec((f1, f2), lambda i: (0, 0)),        # w2
                pl.BlockSpec((1, f2), lambda i: (0, 0)),         # b2
                pl.BlockSpec((f2, head_w), lambda i: (0, 0)),    # fused head W (narrow)
                pl.BlockSpec((1, head_w), lambda i: (0, 0)),     # fused head b
            ],
            out_specs=pl.BlockSpec((tb, head_w), lambda i: (i, 0)),
        ),
        compiler_params=pltpu.CompilerParams(
            dimension_semantics=("parallel",),
            vmem_limit_bytes=vmem_limit,
        ),
    )(state.astype(jnp.float32), w1, b1, w2, b2, w_head, b_head)

    pi = out[:, :actions]
    v = out[:, actions:]
    return pi, v


def init_params(key, input_size, fcl1_size, fcl2_size, actions_num):
    """Deterministic init mimicking PyTorch nn.Linear default U[-1/sqrt(fan_in), 1/sqrt(fan_in)]."""
    def linear(k, fan_in, fan_out):
        kw, kb = jax.random.split(k)
        bound = 1.0 / jnp.sqrt(jnp.float32(fan_in))
        w = jax.random.uniform(kw, (fan_in, fan_out), jnp.float32, -bound, bound)
        b = jax.random.uniform(kb, (1, fan_out), jnp.float32, -bound, bound)
        return w, b

    k1, k2, k3, k4 = jax.random.split(key, 4)
    w1, b1 = linear(k1, input_size, fcl1_size)
    w2, b2 = linear(k2, fcl1_size, fcl2_size)
    w_pi, b_pi = linear(k3, fcl2_size, actions_num)
    w_v, b_v = linear(k4, fcl2_size, 1)
    return {
        "w1": w1, "b1": b1,
        "w2": w2, "b2": b2,
        "w_pi": w_pi, "b_pi": b_pi,
        "w_v": w_v, "b_v": b_v,
    }


if __name__ == "__main__":
    # Small shapes consistent with the module: 8 state features, two hidden
    # layers of 32, 4 actions, batch of 8.
    # TODO(synk): Adam optimizer / save_model / load_model are training &
    # checkpoint I/O, not part of the forward pass, and are not translated.
    B, D_IN, FCL1, FCL2, ACTIONS = 8, 8, 32, 32, 4

    key = jax.random.PRNGKey(0)
    k_params, k_state = jax.random.split(key)

    params = init_params(k_params, D_IN, FCL1, FCL2, ACTIONS)
    state = jax.random.normal(k_state, (B, D_IN), dtype=jnp.float32)

    pi, v = acn_forward(state, params)
    jax.block_until_ready((pi, v))

    assert pi.shape == (B, ACTIONS) and v.shape == (B, 1)

    # Reference 1: mirror the kernel's bf16-in / f32-accumulate math exactly.
    xb = state.astype(jnp.bfloat16)
    h1 = jnp.maximum(jnp.dot(xb, params["w1"].astype(jnp.bfloat16),
                             preferred_element_type=jnp.float32) + params["b1"], 0.0)
    h1 = h1.astype(jnp.bfloat16)
    h2 = jnp.maximum(jnp.dot(h1, params["w2"].astype(jnp.bfloat16),
                             preferred_element_type=jnp.float32) + params["b2"], 0.0)
    h2 = h2.astype(jnp.bfloat16)
    pi_bf = jnp.dot(h2, params["w_pi"].astype(jnp.bfloat16),
                    preferred_element_type=jnp.float32) + params["b_pi"]
    v_bf = jnp.dot(h2, params["w_v"].astype(jnp.bfloat16),
                   preferred_element_type=jnp.float32) + params["b_v"]
    assert jnp.allclose(pi, pi_bf, atol=1e-3, rtol=1e-3), "pi mismatch (bf16 reference)"
    assert jnp.allclose(v, v_bf, atol=1e-3, rtol=1e-3), "v mismatch (bf16 reference)"

    # Reference 2: full-f32 math (loose tolerance to absorb bf16 rounding).
    h1f = jnp.maximum(state @ params["w1"] + params["b1"], 0.0)
    h2f = jnp.maximum(h1f @ params["w2"] + params["b2"], 0.0)
    pi_f = h2f @ params["w_pi"] + params["b_pi"]
    v_f = h2f @ params["w_v"] + params["b_v"]
    assert jnp.allclose(pi, pi_f, atol=5e-2), "pi mismatch (f32 reference)"
    assert jnp.allclose(v, v_f, atol=5e-2), "v mismatch (f32 reference)"

    print("KERNEL_OK")
</pallas_src>

<mosaic_0001>
module attributes {stable_mosaic.version = 11 : i64} {
  func.func @acn_kernel(%arg0: i32, %arg1: memref<256x8xf32, #tpu.memory_space<vmem>>, %arg2: memref<8x32xbf16, #tpu.memory_space<vmem>>, %arg3: memref<1x32xf32, #tpu.memory_space<vmem>>, %arg4: memref<32x32xbf16, #tpu.memory_space<vmem>>, %arg5: memref<1x32xf32, #tpu.memory_space<vmem>>, %arg6: memref<32x5xbf16, #tpu.memory_space<vmem>>, %arg7: memref<1x5xf32, #tpu.memory_space<vmem>>, %arg8: memref<256x5xf32, #tpu.memory_space<vmem>>) attributes {dimension_semantics = [#tpu.dimension_semantics<parallel>], iteration_bounds = array<i64: 1>, scalar_prefetch = 0 : i64, scratch_operands = 0 : i64, tpu.core_type = #tpu.core_type<tc>, window_params = [{transform_indices = @transform_0, window_bounds = array<i64: 256, 8>}, {pipeline_mode = #tpu.pipeline_mode<synchronous>, transform_indices = @transform_1, window_bounds = array<i64: 8, 32>}, {pipeline_mode = #tpu.pipeline_mode<synchronous>, transform_indices = @transform_2, window_bounds = array<i64: 1, 32>}, {pipeline_mode = #tpu.pipeline_mode<synchronous>, transform_indices = @transform_3, window_bounds = array<i64: 32, 32>}, {pipeline_mode = #tpu.pipeline_mode<synchronous>, transform_indices = @transform_4, window_bounds = array<i64: 1, 32>}, {pipeline_mode = #tpu.pipeline_mode<synchronous>, transform_indices = @transform_5, window_bounds = array<i64: 32, 5>}, {pipeline_mode = #tpu.pipeline_mode<synchronous>, transform_indices = @transform_6, window_bounds = array<i64: 1, 5>}, {transform_indices = @transform_7, window_bounds = array<i64: 256, 5>}]} {
    %c0 = arith.constant 0 : index
    %c0_0 = arith.constant 0 : index
    %0 = vector.load %arg1[%c0, %c0_0] : memref<256x8xf32, #tpu.memory_space<vmem>>, vector<256x8xf32>
    %1 = arith.truncf %0 : vector<256x8xf32> to vector<256x8xbf16>
    %c0_1 = arith.constant 0 : index
    %c0_2 = arith.constant 0 : index
    %2 = vector.load %arg2[%c0_1, %c0_2] : memref<8x32xbf16, #tpu.memory_space<vmem>>, vector<8x32xbf16>
    %cst = arith.constant dense<0.000000e+00> : vector<256x32xf32>
    %3 = tpu.matmul %1, %2, %cst {dimension_numbers = #tpu.dot_dimension_numbers<[1], [0], [0], [1], [0, 0, 1, 1], [], []>} : vector<256x8xbf16>, vector<8x32xbf16>, vector<256x32xf32> -> vector<256x32xf32>
    %c0_3 = arith.constant 0 : index
    %c0_4 = arith.constant 0 : index
    %4 = vector.load %arg3[%c0_3, %c0_4] : memref<1x32xf32, #tpu.memory_space<vmem>>, vector<1x32xf32>
    %5 = vector.broadcast %4 : vector<1x32xf32> to vector<256x32xf32>
    %6 = arith.addf %3, %5 : vector<256x32xf32>
    %cst_5 = arith.constant 0.000000e+00 : f32
    %7 = vector.broadcast %cst_5 : f32 to vector<256x32xf32>
    %8 = arith.maximumf %6, %7 : vector<256x32xf32>
    %9 = arith.truncf %8 : vector<256x32xf32> to vector<256x32xbf16>
    %c0_6 = arith.constant 0 : index
    %c0_7 = arith.constant 0 : index
    %10 = vector.load %arg4[%c0_6, %c0_7] : memref<32x32xbf16, #tpu.memory_space<vmem>>, vector<32x32xbf16>
    %cst_8 = arith.constant dense<0.000000e+00> : vector<256x32xf32>
    %11 = tpu.matmul %9, %10, %cst_8 {dimension_numbers = #tpu.dot_dimension_numbers<[1], [0], [0], [1], [0, 0, 1, 1], [], []>} : vector<256x32xbf16>, vector<32x32xbf16>, vector<256x32xf32> -> vector<256x32xf32>
    %c0_9 = arith.constant 0 : index
    %c0_10 = arith.constant 0 : index
    %12 = vector.load %arg5[%c0_9, %c0_10] : memref<1x32xf32, #tpu.memory_space<vmem>>, vector<1x32xf32>
    %13 = vector.broadcast %12 : vector<1x32xf32> to vector<256x32xf32>
    %14 = arith.addf %11, %13 : vector<256x32xf32>
    %cst_11 = arith.constant 0.000000e+00 : f32
    %15 = vector.broadcast %cst_11 : f32 to vector<256x32xf32>
    %16 = arith.maximumf %14, %15 : vector<256x32xf32>
    %17 = arith.truncf %16 : vector<256x32xf32> to vector<256x32xbf16>
    %c0_12 = arith.constant 0 : index
    %c0_13 = arith.constant 0 : index
    %18 = vector.load %arg6[%c0_12, %c0_13] : memref<32x5xbf16, #tpu.memory_space<vmem>>, vector<32x5xbf16>
    %cst_14 = arith.constant dense<0.000000e+00> : vector<256x5xf32>
    %19 = tpu.matmul %17, %18, %cst_14 {dimension_numbers = #tpu.dot_dimension_numbers<[1], [0], [0], [1], [0, 0, 1, 1], [], []>} : vector<256x32xbf16>, vector<32x5xbf16>, vector<256x5xf32> -> vector<256x5xf32>
    %c0_15 = arith.constant 0 : index
    %c0_16 = arith.constant 0 : index
    %20 = vector.load %arg7[%c0_15, %c0_16] : memref<1x5xf32, #tpu.memory_space<vmem>>, vector<1x5xf32>
    %21 = vector.broadcast %20 : vector<1x5xf32> to vector<256x5xf32>
    %22 = arith.addf %19, %21 : vector<256x5xf32>
    %c0_17 = arith.constant 0 : index
    %c0_18 = arith.constant 0 : index
    %23 = vector.load %arg8[%c0_17, %c0_18] : memref<256x5xf32, #tpu.memory_space<vmem>>, vector<256x5xf32>
    tpu.vector_store %arg8[%c0_17, %c0_18], %22 {strides = array<i32>} : memref<256x5xf32, #tpu.memory_space<vmem>>, vector<256x5xf32>,
    return
  }
  func.func @transform_0(%arg0: i32) -> (i32, i32) {
    %c0_i32 = arith.constant 0 : i32
    %c0_i32_0 = arith.constant 0 : i32
    return %arg0, %c0_i32 : i32, i32
  }
  func.func @transform_1(%arg0: i32) -> (i32, i32) {
    %c0_i32 = arith.constant 0 : i32
    %c0_i32_0 = arith.constant 0 : i32
    %c0_i32_1 = arith.constant 0 : i32
    return %c0_i32, %c0_i32_0 : i32, i32
  }
  func.func @transform_2(%arg0: i32) -> (i32, i32) {
    %c0_i32 = arith.constant 0 : i32
    %c0_i32_0 = arith.constant 0 : i32
    %c0_i32_1 = arith.constant 0 : i32
    return %c0_i32, %c0_i32_0 : i32, i32
  }
  func.func @transform_3(%arg0: i32) -> (i32, i32) {
    %c0_i32 = arith.constant 0 : i32
    %c0_i32_0 = arith.constant 0 : i32
    %c0_i32_1 = arith.constant 0 : i32
    return %c0_i32, %c0_i32_0 : i32, i32
  }
  func.func @transform_4(%arg0: i32) -> (i32, i32) {
    %c0_i32 = arith.constant 0 : i32
    %c0_i32_0 = arith.constant 0 : i32
    %c0_i32_1 = arith.constant 0 : i32
    return %c0_i32, %c0_i32_0 : i32, i32
  }
  func.func @transform_5(%arg0: i32) -> (i32, i32) {
    %c0_i32 = arith.constant 0 : i32
    %c0_i32_0 = arith.constant 0 : i32
    %c0_i32_1 = arith.constant 0 : i32
    return %c0_i32, %c0_i32_0 : i32, i32
  }
  func.func @transform_6(%arg0: i32) -> (i32, i32) {
    %c0_i32 = arith.constant 0 : i32
    %c0_i32_0 = arith.constant 0 : i32
    %c0_i32_1 = arith.constant 0 : i32
    return %c0_i32, %c0_i32_0 : i32, i32
  }
  func.func @transform_7(%arg0: i32) -> (i32, i32) {
    %c0_i32 = arith.constant 0 : i32
    %c0_i32_0 = arith.constant 0 : i32
    return %arg0, %c0_i32 : i32, i32
  }
}

</mosaic_0001>

<llo_original>
// kernel: tpu_custom_call.1
$region0: #{tpu_custom_call.1}
  #allocation0 [shape = 'u32[]', space=smem, size = 0x4, offset = 0x4, fixed_abs, tag = 'smem constant byte address 0x4 - core index']
  #allocation1 [shape = 'u32[144,128]{1,0:T(1,128)}', space=vmem, size = 0x12000, scoped, tag = 'internal scratch']
  %s0 = inlined_call_operand.vmem [shape: f32[8,8], index: 0, kind: input, shape index: {}]
  %s1 = inlined_call_operand.hbm [shape: bf16[8,32], index: 1, kind: input, shape index: {}]
  %s2 = inlined_call_operand.vmem [shape: f32[1,32], index: 2, kind: input, shape index: {}]
  %s3 = inlined_call_operand.vmem [shape: bf16[32,32], index: 3, kind: input, shape index: {}]
  %s4 = inlined_call_operand.hbm [shape: f32[1,32], index: 4, kind: input, shape index: {}]
  %s5 = inlined_call_operand.vmem [shape: bf16[32,5], index: 5, kind: input, shape index: {}]
  %s6 = inlined_call_operand.vmem [shape: f32[1,5], index: 6, kind: input, shape index: {}]
  %s7 = inlined_call_operand.hbm [shape: f32[8,5], index: 7, kind: output, shape index: {}]
  %s8 = sld [smem:[#allocation0]]
  $region46: #{tpu_custom_call.1} parent=0
    _
  %s10 = ssub.s32 1, %s8
  %s11 = scalar_select 0, %s10, %s8
  $region1: #{tpu_custom_call.1} parent=0
    #allocation2 [shape = 'u8[2048]{0}', space=vmem, size = 0x800, scoped, tag = 'input window, operand 1, single buffered']
    #allocation3 [shape = 's32[1]{0}', space=sflag, size = 0x4, scoped, tag = 'scoped memory for tpu_custom_call.1']
    #allocation4 [shape = 's32[1]{0}', space=sflag, size = 0x4, scoped, tag = 'scoped memory for tpu_custom_call.1']
    #allocation5 [shape = 'u8[512]{0}', space=vmem, size = 0x400, scoped, tag = 'input window, operand 4, single buffered']
    #allocation6 [shape = 's32[1]{0}', space=sflag, size = 0x4, scoped, tag = 'scoped memory for tpu_custom_call.1']
    #allocation7 [shape = 'u8[131072]{0}', space=vmem, size = 0x20000, scoped, tag = 'output window, operand 0, single buffered']
    %12 = vsyncpa [#allocation3], 0
    %13 = vsyncpa [#allocation6], 0
    %14 = vsyncpa [#allocation4], 0
    // Predicated region
    $region2: #{tpu_custom_call.1} parent=1 // pred_check
      _
    $region3: #{tpu_custom_call.1} parent=1 // pred_check_branch
      %16 = sbr.rel (0) target = $region5
    $region4: #{tpu_custom_call.1} parent=1 // pred_region
      _
    $region5: #{tpu_custom_call.1} parent=1 // pred_fallthru
      _
    // Predicated region
    $region6: #{tpu_custom_call.1} parent=1 // pred_check
      _
    $region7: #{tpu_custom_call.1} parent=1 // pred_check_branch
      %18 = sbr.rel (0) target = $region9
    $region8: #{tpu_custom_call.1} parent=1 // pred_region
      %s20 = ssub.s32 64, 64
      %21 = vsyncadd [#allocation3], %s20
      %s23 = sshll.u32 [#allocation2], 4
      %s24 = int_to_ptr.vmem [resolvable:$true] %s23
      %26 = dma.hbm_to_vmem [thread:$0]  %s1, 64, %s24, [#allocation3]
    $region9: #{tpu_custom_call.1} parent=1 // pred_fallthru
      _
    // Predicated region
    $region10: #{tpu_custom_call.1} parent=1 // pred_check
      _
    $region11: #{tpu_custom_call.1} parent=1 // pred_check_branch
      %28 = sbr.rel (0) target = $region13
    $region12: #{tpu_custom_call.1} parent=1 // pred_region
      _
    $region13: #{tpu_custom_call.1} parent=1 // pred_fallthru
      _
    // Predicated region
    $region14: #{tpu_custom_call.1} parent=1 // pred_check
      _
    $region15: #{tpu_custom_call.1} parent=1 // pred_check_branch
      %30 = sbr.rel (0) target = $region17
    $region16: #{tpu_custom_call.1} parent=1 // pred_region
      _
    $region17: #{tpu_custom_call.1} parent=1 // pred_fallthru
      _
    // Predicated region
    $region18: #{tpu_custom_call.1} parent=1 // pred_check
      _
    $region19: #{tpu_custom_call.1} parent=1 // pred_check_branch
      %32 = sbr.rel (0) target = $region21
    $region20: #{tpu_custom_call.1} parent=1 // pred_region
      %s34 = ssub.s32 16, 16
      %35 = vsyncadd [#allocation6], %s34
      %s37 = sshll.u32 [#allocation5], 4
      %s38 = int_to_ptr.vmem [resolvable:$true] %s37
      %40 = dma.hbm_to_vmem [thread:$0]  %s4, 16, %s38, [#allocation6]
    $region21: #{tpu_custom_call.1} parent=1 // pred_fallthru
      _
    // Predicated region
    $region22: #{tpu_custom_call.1} parent=1 // pred_check
      _
    $region23: #{tpu_custom_call.1} parent=1 // pred_check_branch
      %42 = sbr.rel (0) target = $region25
    $region24: #{tpu_custom_call.1} parent=1 // pred_region
      _
    $region25: #{tpu_custom_call.1} parent=1 // pred_fallthru
      _
    // Predicated region
    $region26: #{tpu_custom_call.1} parent=1 // pred_check
      _
    $region27: #{tpu_custom_call.1} parent=1 // pred_check_branch
      %44 = sbr.rel (0) target = $region29
    $region28: #{tpu_custom_call.1} parent=1 // pred_region
      _
    $region29: #{tpu_custom_call.1} parent=1 // pred_fallthru
      _
    // Predicated region
    $region30: #{tpu_custom_call.1} parent=1 // pred_check
      _
    $region31: #{tpu_custom_call.1} parent=1 // pred_check_branch
      %46 = sbr.rel (0) target = $region33
    $region32: #{tpu_custom_call.1} parent=1 // pred_region
      %47 = dma.done [#allocation3], 64
    $region33: #{tpu_custom_call.1} parent=1 // pred_fallthru
      _
    // Predicated region
    $region34: #{tpu_custom_call.1} parent=1 // pred_check
      _
    $region35: #{tpu_custom_call.1} parent=1 // pred_check_branch
      %49 = sbr.rel (0) target = $region37
    $region36: #{tpu_custom_call.1} parent=1 // pred_region
      %50 = dma.done [#allocation6], 16
    $region37: #{tpu_custom_call.1} parent=1 // pred_fallthru
      _
    %v52 = vld [vmem:[%s0] sm:$0xff]
    %v53 = vld [vmem:[%s0 + $0x8] sm:$0xff]
    %v54 = vld [vmem:[%s0 + $0x10] sm:$0xff]
    %v55 = vld [vmem:[%s0 + $0x18] sm:$0xff]
    %v56 = vld [vmem:[%s0 + $0x20] sm:$0xff]
    %v57 = vld [vmem:[%s0 + $0x28] sm:$0xff]
    %v58 = vld [vmem:[%s0 + $0x30] sm:$0xff]
    %v59 = vld [vmem:[%s0 + $0x38] sm:$0xff]
    %v60 = vld [vmem:[%s0 + $0x40] sm:$0xff]
    %v61 = vld [vmem:[%s0 + $0x48] sm:$0xff]
    %v62 = vld [vmem:[%s0 + $0x50] sm:$0xff]
    %v63 = vld [vmem:[%s0 + $0x58] sm:$0xff]
    %v64 = vld [vmem:[%s0 + $0x60] sm:$0xff]
    %v65 = vld [vmem:[%s0 + $0x68] sm:$0xff]
    %v66 = vld [vmem:[%s0 + $0x70] sm:$0xff]
    %v67 = vld [vmem:[%s0 + $0x78] sm:$0xff]
    %v68 = vld [vmem:[%s0 + $0x80] sm:$0xff]
    %v69 = vld [vmem:[%s0 + $0x88] sm:$0xff]
    %v70 = vld [vmem:[%s0 + $0x90] sm:$0xff]
    %v71 = vld [vmem:[%s0 + $0x98] sm:$0xff]
    %v72 = vld [vmem:[%s0 + $0xa0] sm:$0xff]
    %v73 = vld [vmem:[%s0 + $0xa8] sm:$0xff]
    %v74 = vld [vmem:[%s0 + $0xb0] sm:$0xff]
    %v75 = vld [vmem:[%s0 + $0xb8] sm:$0xff]
    %v76 = vld [vmem:[%s0 + $0xc0] sm:$0xff]
    %v77 = vld [vmem:[%s0 + $0xc8] sm:$0xff]
    %v78 = vld [vmem:[%s0 + $0xd0] sm:$0xff]
    %v79 = vld [vmem:[%s0 + $0xd8] sm:$0xff]
    %v80 = vld [vmem:[%s0 + $0xe0] sm:$0xff]
    %v81 = vld [vmem:[%s0 + $0xe8] sm:$0xff]
    %v82 = vld [vmem:[%s0 + $0xf0] sm:$0xff]
    %v83 = vld [vmem:[%s0 + $0xf8] sm:$0xff]
    %v84 = vpack.c.bf16 %v53, %v52
    %v85 = vpack.c.bf16 %v55, %v54
    %v86 = vpack.c.bf16 %v57, %v56
    %v87 = vpack.c.bf16 %v59, %v58
    %v88 = vpack.c.bf16 %v61, %v60
    %v89 = vpack.c.bf16 %v63, %v62
    %v90 = vpack.c.bf16 %v65, %v64
    %v91 = vpack.c.bf16 %v67, %v66
    %v92 = vpack.c.bf16 %v69, %v68
    %v93 = vpack.c.bf16 %v71, %v70
    %v94 = vpack.c.bf16 %v73, %v72
    %v95 = vpack.c.bf16 %v75, %v74
    %v96 = vpack.c.bf16 %v77, %v76
    %v97 = vpack.c.bf16 %v79, %v78
    %v98 = vpack.c.bf16 %v81, %v80
    %v99 = vpack.c.bf16 %v83, %v82
    %v100 = vld [vmem:[#allocation2] sm:$0xf]
    %v101 = vld [vmem:[%s2] sm:$0x1]
    %v103 = vlaneseq
    %v104 = vshrl.u32 %v103, 7
    %v105 = vsub.s32 0, %v104
    %v106 = vrot.slane %v101, %v105
    %vm108 = vcmask 64512
    %v110 = vsel %vm108, %v84, 0
    %v113 = vsel %vm108, %v85, 0
    %v116 = vsel %vm108, %v86, 0
    %v119 = vsel %vm108, %v87, 0
    %v122 = vsel %vm108, %v88, 0
    %v125 = vsel %vm108, %v89, 0
    %v128 = vsel %vm108, %v90, 0
    %v131 = vsel %vm108, %v91, 0
    %v134 = vsel %vm108, %v92, 0
    %v137 = vsel %vm108, %v93, 0
    %v140 = vsel %vm108, %v94, 0
    %v143 = vsel %vm108, %v95, 0
    %v146 = vsel %vm108, %v96, 0
    %v149 = vsel %vm108, %v97, 0
    %v152 = vsel %vm108, %v98, 0
    %v155 = vsel %vm108, %v99, 0
    %vm157 = vcmask 1043456
    %v159 = vsel %vm157, %v100, 0
    %161 = vmatprep.subr.bf16.mxu0 0
    %162 = vmatpush1.bf16.msra.mxu0 0
    %163 = vmatprep.subr.bf16.mxu0 0
    %164 = vmatpush1.bf16.msra.mxu0 0
    %165 = vmatprep.subr.bf16.mxu0 0
    %166 = vmatpush1.bf16.msra.mxu0 0
    %167 = vmatprep.subr.bf16.mxu0 0
    %168 = vmatpush1.bf16.msra.mxu0 0
    %169 = vmatprep.subr.bf16.mxu0 0
    %170 = vmatpush1.bf16.msra.mxu0 0
    %171 = vmatprep.subr.bf16.mxu0 0
    %172 = vmatpush1.bf16.msra.mxu0 0
    %173 = vmatprep.subr.bf16.mxu0 0
    %174 = vmatpush1.bf16.msra.mxu0 0
    %175 = vmatprep.subr.bf16.mxu0 0
    %176 = vmatpush1.bf16.msra.mxu0 %v159
    %177 = vmatprep.subr.bf16.mxu0 0
    %178 = vmatpush2.bf16.msra.mxu0 0
    %179 = vmatprep.subr.bf16.mxu0 0
    %180 = vmatpush2.bf16.msra.mxu0 0
    %181 = vmatprep.subr.bf16.mxu0 0
    %182 = vmatpush2.bf16.msra.mxu0 0
    %183 = vmatprep.subr.bf16.mxu0 0
    %184 = vmatpush2.bf16.msra.mxu0 0
    %185 = vmatprep.subr.bf16.mxu0 0
    %186 = vmatpush2.bf16.msra.mxu0 0
    %187 = vmatprep.subr.bf16.mxu0 0
    %188 = vmatpush2.bf16.msra.mxu0 0
    %189 = vmatprep.subr.bf16.mxu0 0
    %190 = vmatpush2.bf16.msra.mxu0 0
    %191 = vmatprep.subr.bf16.mxu0 0
    %192 = vmatpush2.bf16.msra.mxu0 0
    %193 = vmatprep.mubr.bf16.mxu0 0
    %194 = vmatmul.mubr.bf16.gmra.mxu0 %v110
    %v195 = vpop.f32.mrf.mxu0
    %v196 = vadd.f32 %v106, %v195
    %v197 = vpop.f32.mrf.mxu0
    %v198 = vpop.f32.mrf.mxu0
    %v199 = vadd.f32 %v106, %v198
    %v200 = vpop.f32.mrf.mxu0
    %201 = vmatprep.mubr.bf16.mxu0 0
    %202 = vmatmul.mubr.bf16.gmra.mxu0 %v113
    %v203 = vpop.f32.mrf.mxu0
    %v204 = vadd.f32 %v106, %v203
    %v205 = vpop.f32.mrf.mxu0
    %v206 = vpop.f32.mrf.mxu0
    %v207 = vadd.f32 %v106, %v206
    %v208 = vpop.f32.mrf.mxu0
    %209 = vmatprep.mubr.bf16.mxu0 0
    %210 = vmatmul.mubr.bf16.gmra.mxu0 %v116
    %v211 = vpop.f32.mrf.mxu0
    %v212 = vadd.f32 %v106, %v211
    %v213 = vpop.f32.mrf.mxu0
    %v214 = vpop.f32.mrf.mxu0
    %v215 = vadd.f32 %v106, %v214
    %v216 = vpop.f32.mrf.mxu0
    %217 = vmatprep.mubr.bf16.mxu0 0
    %218 = vmatmul.mubr.bf16.gmra.mxu0 %v119
    %v219 = vpop.f32.mrf.mxu0
    %v220 = vadd.f32 %v106, %v219
    %v221 = vpop.f32.mrf.mxu0
    %v222 = vpop.f32.mrf.mxu0
    %v223 = vadd.f32 %v106, %v222
    %v224 = vpop.f32.mrf.mxu0
    %225 = vmatprep.mubr.bf16.mxu0 0
    %226 = vmatmul.mubr.bf16.gmra.mxu0 %v122
    %v227 = vpop.f32.mrf.mxu0
    %v228 = vadd.f32 %v106, %v227
    %v229 = vpop.f32.mrf.mxu0
    %v230 = vpop.f32.mrf.mxu0
    %v231 = vadd.f32 %v106, %v230
    %v232 = vpop.f32.mrf.mxu0
    %233 = vmatprep.mubr.bf16.mxu0 0
    %234 = vmatmul.mubr.bf16.gmra.mxu0 %v125
    %v235 = vpop.f32.mrf.mxu0
    %v236 = vadd.f32 %v106, %v235
    %v237 = vpop.f32.mrf.mxu0
    %v238 = vpop.f32.mrf.mxu0
    %v239 = vadd.f32 %v106, %v238
    %v240 = vpop.f32.mrf.mxu0
    %241 = vmatprep.mubr.bf16.mxu0 0
    %242 = vmatmul.mubr.bf16.gmra.mxu0 %v128
    %v243 = vpop.f32.mrf.mxu0
    %v244 = vadd.f32 %v106, %v243
    %v245 = vpop.f32.mrf.mxu0
    %v246 = vpop.f32.mrf.mxu0
    %v247 = vadd.f32 %v106, %v246
    %v248 = vpop.f32.mrf.mxu0
    %249 = vmatprep.mubr.bf16.mxu0 0
    %250 = vmatmul.mubr.bf16.gmra.mxu0 %v131
    %v251 = vpop.f32.mrf.mxu0
    %v252 = vadd.f32 %v106, %v251
    %v253 = vpop.f32.mrf.mxu0
    %v254 = vpop.f32.mrf.mxu0
    %v255 = vadd.f32 %v106, %v254
    %v256 = vpop.f32.mrf.mxu0
    %257 = vmatprep.mubr.bf16.mxu0 0
    %258 = vmatmul.mubr.bf16.gmra.mxu0 %v134
    %v259 = vpop.f32.mrf.mxu0
    %v260 = vadd.f32 %v106, %v259
    %v261 = vpop.f32.mrf.mxu0
    %v262 = vpop.f32.mrf.mxu0
    %v263 = vadd.f32 %v106, %v262
    %v264 = vpop.f32.mrf.mxu0
    %265 = vmatprep.mubr.bf16.mxu0 0
    %266 = vmatmul.mubr.bf16.gmra.mxu0 %v137
    %v267 = vpop.f32.mrf.mxu0
    %v268 = vadd.f32 %v106, %v267
    %v269 = vpop.f32.mrf.mxu0
    %v270 = vpop.f32.mrf.mxu0
    %v271 = vadd.f32 %v106, %v270
    %v272 = vpop.f32.mrf.mxu0
    %273 = vmatprep.mubr.bf16.mxu0 0
    %274 = vmatmul.mubr.bf16.gmra.mxu0 %v140
    %v275 = vpop.f32.mrf.mxu0
    %v276 = vadd.f32 %v106, %v275
    %v277 = vpop.f32.mrf.mxu0
    %v278 = vpop.f32.mrf.mxu0
    %v279 = vadd.f32 %v106, %v278
    %v280 = vpop.f32.mrf.mxu0
    %281 = vmatprep.mubr.bf16.mxu0 0
    %282 = vmatmul.mubr.bf16.gmra.mxu0 %v143
    %v283 = vpop.f32.mrf.mxu0
    %v284 = vadd.f32 %v106, %v283
    %v285 = vpop.f32.mrf.mxu0
    %v286 = vpop.f32.mrf.mxu0
    %v287 = vadd.f32 %v106, %v286
    %v288 = vpop.f32.mrf.mxu0
    %289 = vmatprep.mubr.bf16.mxu0 0
    %290 = vmatmul.mubr.bf16.gmra.mxu0 %v146
    %v291 = vpop.f32.mrf.mxu0
    %v292 = vadd.f32 %v106, %v291
    %v293 = vpop.f32.mrf.mxu0
    %v294 = vpop.f32.mrf.mxu0
    %v295 = vadd.f32 %v106, %v294
    %v296 = vpop.f32.mrf.mxu0
    %297 = vmatprep.mubr.bf16.mxu0 0
    %298 = vmatmul.mubr.bf16.gmra.mxu0 %v149
    %v299 = vpop.f32.mrf.mxu0
    %v300 = vadd.f32 %v106, %v299
    %v301 = vpop.f32.mrf.mxu0
    %v302 = vpop.f32.mrf.mxu0
    %v303 = vadd.f32 %v106, %v302
    %v304 = vpop.f32.mrf.mxu0
    %305 = vmatprep.mubr.bf16.mxu0 0
    %306 = vmatmul.mubr.bf16.gmra.mxu0 %v152
    %v307 = vpop.f32.mrf.mxu0
    %v308 = vadd.f32 %v106, %v307
    %v309 = vpop.f32.mrf.mxu0
    %v310 = vpop.f32.mrf.mxu0
    %v311 = vadd.f32 %v106, %v310
    %v312 = vpop.f32.mrf.mxu0
    %313 = vmatprep.mubr.bf16.mxu0 0
    %314 = vmatmul.mubr.bf16.gmra.mxu0 %v155
    %v315 = vpop.f32.mrf.mxu0
    %v316 = vadd.f32 %v106, %v315
    %v317 = vpop.f32.mrf.mxu0
    %v318 = vpop.f32.mrf.mxu0
    %v319 = vadd.f32 %v106, %v318
    %v320 = vpop.f32.mrf.mxu0
    %321 = vdwg.mxu0
    %v322 = vmax.f32 %v196, 0.0
    %v323 = vmax.f32 %v199, 0.0
    %v324 = vmax.f32 %v204, 0.0
    %v325 = vmax.f32 %v207, 0.0
    %v326 = vmax.f32 %v212, 0.0
    %v327 = vmax.f32 %v215, 0.0
    %v328 = vmax.f32 %v220, 0.0
    %v329 = vmax.f32 %v223, 0.0
    %v330 = vmax.f32 %v228, 0.0
    %v331 = vmax.f32 %v231, 0.0
    %v332 = vmax.f32 %v236, 0.0
    %v333 = vmax.f32 %v239, 0.0
    %v334 = vmax.f32 %v244, 0.0
    %v335 = vmax.f32 %v247, 0.0
    %v336 = vmax.f32 %v252, 0.0
    %v337 = vmax.f32 %v255, 0.0
    %v338 = vmax.f32 %v260, 0.0
    %v339 = vmax.f32 %v263, 0.0
    %v340 = vmax.f32 %v268, 0.0
    %v341 = vmax.f32 %v271, 0.0
    %v342 = vmax.f32 %v276, 0.0
    %v343 = vmax.f32 %v279, 0.0
    %v344 = vmax.f32 %v284, 0.0
    %v345 = vmax.f32 %v287, 0.0
    %v346 = vmax.f32 %v292, 0.0
    %v347 = vmax.f32 %v295, 0.0
    %v348 = vmax.f32 %v300, 0.0
    %v349 = vmax.f32 %v303, 0.0
    %v350 = vmax.f32 %v308, 0.0
    %v351 = vmax.f32 %v311, 0.0
    %v352 = vmax.f32 %v316, 0.0
    %v353 = vmax.f32 %v319, 0.0
    %v354 = vpack.c.bf16 %v323, %v322
    %v355 = vpack.c.bf16 %v325, %v324
    %v356 = vpack.c.bf16 %v327, %v326
    %v357 = vpack.c.bf16 %v329, %v328
    %v358 = vpack.c.bf16 %v331, %v330
    %v359 = vpack.c.bf16 %v333, %v332
    %v360 = vpack.c.bf16 %v335, %v334
    %v361 = vpack.c.bf16 %v337, %v336
    %v362 = vpack.c.bf16 %v339, %v338
    %v363 = vpack.c.bf16 %v341, %v340
    %v364 = vpack.c.bf16 %v343, %v342
    %v365 = vpack.c.bf16 %v345, %v344
    %v366 = vpack.c.bf16 %v347, %v346
    %v367 = vpack.c.bf16 %v349, %v348
    %v368 = vpack.c.bf16 %v351, %v350
    %v369 = vpack.c.bf16 %v353, %v352
    %v370 = vld [vmem:[%s3] sm:$0xf]
    %v371 = vld [vmem:[%s3 + $0x4] sm:$0xf]
    %v372 = vld [vmem:[%s3 + $0x8] sm:$0xf]
    %v373 = vld [vmem:[%s3 + $0xc] sm:$0xf]
    %v374 = vld [vmem:[#allocation5] sm:$0x1]
    %v376 = vlaneseq
    %v377 = vshrl.u32 %v376, 7
    %v378 = vsub.s32 0, %v377
    %v379 = vrot.slane %v374, %v378
    %v385 = vunpack.c.l.b16 %v370
    %v386 = vunpack.c.l.b16 %v371
    %v387 = vunpack.c.l.b16 %v372
    %v388 = vunpack.c.l.b16 %v373
    %v389 = vpack.c.b16 %v386, %v385
    %v390 = vpack.c.b16 %v388, %v387
    %vm393 = vcmask 261120
    %v395 = vsel %vm393, %v354, 0
    %v398 = vsel %vm393, %v355, 0
    %v401 = vsel %vm393, %v356, 0
    %v404 = vsel %vm393, %v357, 0
    %v407 = vsel %vm393, %v358, 0
    %v410 = vsel %vm393, %v359, 0
    %v413 = vsel %vm393, %v360, 0
    %v416 = vsel %vm393, %v361, 0
    %v419 = vsel %vm393, %v362, 0
    %v422 = vsel %vm393, %v363, 0
    %v425 = vsel %vm393, %v364, 0
    %v428 = vsel %vm393, %v365, 0
    %v431 = vsel %vm393, %v366, 0
    %v434 = vsel %vm393, %v367, 0
    %v437 = vsel %vm393, %v368, 0
    %v440 = vsel %vm393, %v369, 0
    %442 = vmatprep.subr.bf16.mxu0 0
    %443 = vmatpush1.bf16.msra.mxu0 0
    %444 = vmatprep.subr.bf16.mxu0 0
    %445 = vmatpush1.bf16.msra.mxu0 0
    %446 = vmatprep.subr.bf16.mxu0 0
    %447 = vmatpush1.bf16.msra.mxu0 0
    %448 = vmatprep.subr.bf16.mxu0 0
    %449 = vmatpush1.bf16.msra.mxu0 0
    %450 = vmatprep.subr.bf16.mxu0 0
    %451 = vmatpush1.bf16.msra.mxu0 0
    %452 = vmatprep.subr.bf16.mxu0 0
    %453 = vmatpush1.bf16.msra.mxu0 0
    %454 = vmatprep.subr.bf16.mxu0 0
    %455 = vmatpush1.bf16.msra.mxu0 %v390
    %456 = vmatprep.subr.bf16.mxu0 0
    %457 = vmatpush1.bf16.msra.mxu0 %v389
    %458 = vmatprep.subr.bf16.mxu0 0
    %459 = vmatpush2.bf16.msra.mxu0 0
    %460 = vmatprep.subr.bf16.mxu0 0
    %461 = vmatpush2.bf16.msra.mxu0 0
    %462 = vmatprep.subr.bf16.mxu0 0
    %463 = vmatpush2.bf16.msra.mxu0 0
    %464 = vmatprep.subr.bf16.mxu0 0
    %465 = vmatpush2.bf16.msra.mxu0 0
    %466 = vmatprep.subr.bf16.mxu0 0
    %467 = vmatpush2.bf16.msra.mxu0 0
    %468 = vmatprep.subr.bf16.mxu0 0
    %469 = vmatpush2.bf16.msra.mxu0 0
    %470 = vmatprep.subr.bf16.mxu0 0
    %471 = vmatpush2.bf16.msra.mxu0 0
    %472 = vmatprep.subr.bf16.mxu0 0
    %473 = vmatpush2.bf16.msra.mxu0 0
    %474 = vmatprep.mubr.bf16.mxu0 0
    %475 = vmatmul.mubr.bf16.gmra.mxu0 %v395
    %v476 = vpop.f32.mrf.mxu0
    %v477 = vadd.f32 %v379, %v476
    %v478 = vpop.f32.mrf.mxu0
    %v479 = vpop.f32.mrf.mxu0
    %v480 = vadd.f32 %v379, %v479
    %v481 = vpop.f32.mrf.mxu0
    %482 = vmatprep.mubr.bf16.mxu0 0
    %483 = vmatmul.mubr.bf16.gmra.mxu0 %v398
    %v484 = vpop.f32.mrf.mxu0
    %v485 = vadd.f32 %v379, %v484
    %v486 = vpop.f32.mrf.mxu0
    %v487 = vpop.f32.mrf.mxu0
    %v488 = vadd.f32 %v379, %v487
    %v489 = vpop.f32.mrf.mxu0
    %490 = vmatprep.mubr.bf16.mxu0 0
    %491 = vmatmul.mubr.bf16.gmra.mxu0 %v401
    %v492 = vpop.f32.mrf.mxu0
    %v493 = vadd.f32 %v379, %v492
    %v494 = vpop.f32.mrf.mxu0
    %v495 = vpop.f32.mrf.mxu0
    %v496 = vadd.f32 %v379, %v495
    %v497 = vpop.f32.mrf.mxu0
    %498 = vmatprep.mubr.bf16.mxu0 0
    %499 = vmatmul.mubr.bf16.gmra.mxu0 %v404
    %v500 = vpop.f32.mrf.mxu0
    %v501 = vadd.f32 %v379, %v500
    %v502 = vpop.f32.mrf.mxu0
    %v503 = vpop.f32.mrf.mxu0
    %v504 = vadd.f32 %v379, %v503
    %v505 = vpop.f32.mrf.mxu0
    %506 = vmatprep.mubr.bf16.mxu0 0
    %507 = vmatmul.mubr.bf16.gmra.mxu0 %v407
    %v508 = vpop.f32.mrf.mxu0
    %v509 = vadd.f32 %v379, %v508
    %v510 = vpop.f32.mrf.mxu0
    %v511 = vpop.f32.mrf.mxu0
    %v512 = vadd.f32 %v379, %v511
    %v513 = vpop.f32.mrf.mxu0
    %514 = vmatprep.mubr.bf16.mxu0 0
    %515 = vmatmul.mubr.bf16.gmra.mxu0 %v410
    %v516 = vpop.f32.mrf.mxu0
    %v517 = vadd.f32 %v379, %v516
    %v518 = vpop.f32.mrf.mxu0
    %v519 = vpop.f32.mrf.mxu0
    %v520 = vadd.f32 %v379, %v519
    %v521 = vpop.f32.mrf.mxu0
    %522 = vmatprep.mubr.bf16.mxu0 0
    %523 = vmatmul.mubr.bf16.gmra.mxu0 %v413
    %v524 = vpop.f32.mrf.mxu0
    %v525 = vadd.f32 %v379, %v524
    %v526 = vpop.f32.mrf.mxu0
    %v527 = vpop.f32.mrf.mxu0
    %v528 = vadd.f32 %v379, %v527
    %v529 = vpop.f32.mrf.mxu0
    %530 = vmatprep.mubr.bf16.mxu0 0
    %531 = vmatmul.mubr.bf16.gmra.mxu0 %v416
    %v532 = vpop.f32.mrf.mxu0
    %v533 = vadd.f32 %v379, %v532
    %v534 = vpop.f32.mrf.mxu0
    %v535 = vpop.f32.mrf.mxu0
    %v536 = vadd.f32 %v379, %v535
    %v537 = vpop.f32.mrf.mxu0
    %538 = vmatprep.mubr.bf16.mxu0 0
    %539 = vmatmul.mubr.bf16.gmra.mxu0 %v419
    %v540 = vpop.f32.mrf.mxu0
    %v541 = vadd.f32 %v379, %v540
    %v542 = vpop.f32.mrf.mxu0
    %v543 = vpop.f32.mrf.mxu0
    %v544 = vadd.f32 %v379, %v543
    %v545 = vpop.f32.mrf.mxu0
    %546 = vmatprep.mubr.bf16.mxu0 0
    %547 = vmatmul.mubr.bf16.gmra.mxu0 %v422
    %v548 = vpop.f32.mrf.mxu0
    %v549 = vadd.f32 %v379, %v548
    %v550 = vpop.f32.mrf.mxu0
    %v551 = vpop.f32.mrf.mxu0
    %v552 = vadd.f32 %v379, %v551
    %v553 = vpop.f32.mrf.mxu0
    %554 = vmatprep.mubr.bf16.mxu0 0
    %555 = vmatmul.mubr.bf16.gmra.mxu0 %v425
    %v556 = vpop.f32.mrf.mxu0
    %v557 = vadd.f32 %v379, %v556
    %v558 = vpop.f32.mrf.mxu0
    %v559 = vpop.f32.mrf.mxu0
    %v560 = vadd.f32 %v379, %v559
    %v561 = vpop.f32.mrf.mxu0
    %562 = vmatprep.mubr.bf16.mxu0 0
    %563 = vmatmul.mubr.bf16.gmra.mxu0 %v428
    %v564 = vpop.f32.mrf.mxu0
    %v565 = vadd.f32 %v379, %v564
    %v566 = vpop.f32.mrf.mxu0
    %v567 = vpop.f32.mrf.mxu0
    %v568 = vadd.f32 %v379, %v567
    %v569 = vpop.f32.mrf.mxu0
    %570 = vmatprep.mubr.bf16.mxu0 0
    %571 = vmatmul.mubr.bf16.gmra.mxu0 %v431
    %v572 = vpop.f32.mrf.mxu0
    %v573 = vadd.f32 %v379, %v572
    %v574 = vpop.f32.mrf.mxu0
    %v575 = vpop.f32.mrf.mxu0
    %v576 = vadd.f32 %v379, %v575
    %v577 = vpop.f32.mrf.mxu0
    %578 = vmatprep.mubr.bf16.mxu0 0
    %579 = vmatmul.mubr.bf16.gmra.mxu0 %v434
    %v580 = vpop.f32.mrf.mxu0
    %v581 = vadd.f32 %v379, %v580
    %v582 = vpop.f32.mrf.mxu0
    %v583 = vpop.f32.mrf.mxu0
    %v584 = vadd.f32 %v379, %v583
    %v585 = vpop.f32.mrf.mxu0
    %586 = vmatprep.mubr.bf16.mxu0 0
    %587 = vmatmul.mubr.bf16.gmra.mxu0 %v437
    %v588 = vpop.f32.mrf.mxu0
    %v589 = vadd.f32 %v379, %v588
    %v590 = vpop.f32.mrf.mxu0
    %v591 = vpop.f32.mrf.mxu0
    %v592 = vadd.f32 %v379, %v591
    %v593 = vpop.f32.mrf.mxu0
    %594 = vmatprep.mubr.bf16.mxu0 0
    %595 = vmatmul.mubr.bf16.gmra.mxu0 %v440
    %v596 = vpop.f32.mrf.mxu0
    %v597 = vadd.f32 %v379, %v596
    %v598 = vpop.f32.mrf.mxu0
    %v599 = vpop.f32.mrf.mxu0
    %v600 = vadd.f32 %v379, %v599
    %v601 = vpop.f32.mrf.mxu0
    %602 = vdwg.mxu0
    %v603 = vmax.f32 %v477, 0.0
    %v604 = vmax.f32 %v480, 0.0
    %v605 = vmax.f32 %v485, 0.0
    %v606 = vmax.f32 %v488, 0.0
    %v607 = vmax.f32 %v493, 0.0
    %v608 = vmax.f32 %v496, 0.0
    %v609 = vmax.f32 %v501, 0.0
    %v610 = vmax.f32 %v504, 0.0
    %v611 = vmax.f32 %v509, 0.0
    %v612 = vmax.f32 %v512, 0.0
    %v613 = vmax.f32 %v517, 0.0
    %v614 = vmax.f32 %v520, 0.0
    %v615 = vmax.f32 %v525, 0.0
    %v616 = vmax.f32 %v528, 0.0
    %v617 = vmax.f32 %v533, 0.0
    %v618 = vmax.f32 %v536, 0.0
    %v619 = vmax.f32 %v541, 0.0
    %v620 = vmax.f32 %v544, 0.0
    %v621 = vmax.f32 %v549, 0.0
    %v622 = vmax.f32 %v552, 0.0
    %v623 = vmax.f32 %v557, 0.0
    %v624 = vmax.f32 %v560, 0.0
    %v625 = vmax.f32 %v565, 0.0
    %v626 = vmax.f32 %v568, 0.0
    %v627 = vmax.f32 %v573, 0.0
    %v628 = vmax.f32 %v576, 0.0
    %v629 = vmax.f32 %v581, 0.0
    %v630 = vmax.f32 %v584, 0.0
    %v631 = vmax.f32 %v589, 0.0
    %v632 = vmax.f32 %v592, 0.0
    %v633 = vmax.f32 %v597, 0.0
    %v634 = vmax.f32 %v600, 0.0
    %v635 = vpack.c.bf16 %v604, %v603
    %v636 = vpack.c.bf16 %v606, %v605
    %v637 = vpack.c.bf16 %v608, %v607
    %v638 = vpack.c.bf16 %v610, %v609
    %v639 = vpack.c.bf16 %v612, %v611
    %v640 = vpack.c.bf16 %v614, %v613
    %v641 = vpack.c.bf16 %v616, %v615
    %v642 = vpack.c.bf16 %v618, %v617
    %v643 = vpack.c.bf16 %v620, %v619
    %v644 = vpack.c.bf16 %v622, %v621
    %v645 = vpack.c.bf16 %v624, %v623
    %v646 = vpack.c.bf16 %v626, %v625
    %v647 = vpack.c.bf16 %v628, %v627
    %v648 = vpack.c.bf16 %v630, %v629
    %v649 = vpack.c.bf16 %v632, %v631
    %v650 = vpack.c.bf16 %v634, %v633
    %v651 = vld [vmem:[%s5] sm:$0xf]
    %v652 = vld [vmem:[%s5 + $0x4] sm:$0xf]
    %v653 = vld [vmem:[%s5 + $0x8] sm:$0xf]
    %v654 = vld [vmem:[%s5 + $0xc] sm:$0xf]
    %v655 = vld [vmem:[%s6] sm:$0x1]
    %v657 = vlaneseq
    %v658 = vshrl.u32 %v657, 7
    %v659 = vsub.s32 0, %v658
    %v660 = vrot.slane %v655, %v659
    %v666 = vunpack.c.l.b16 %v651
    %v667 = vunpack.c.l.b16 %v652
    %v668 = vunpack.c.l.b16 %v653
    %v669 = vunpack.c.l.b16 %v654
    %v670 = vpack.c.b16 %v667, %v666
    %v671 = vpack.c.b16 %v669, %v668
    %v675 = vsel %vm393, %v635, 0
    %v678 = vsel %vm393, %v636, 0
    %v681 = vsel %vm393, %v637, 0
    %v684 = vsel %vm393, %v638, 0
    %v687 = vsel %vm393, %v639, 0
    %v690 = vsel %vm393, %v640, 0
    %v693 = vsel %vm393, %v641, 0
    %v696 = vsel %vm393, %v642, 0
    %v699 = vsel %vm393, %v643, 0
    %v702 = vsel %vm393, %v644, 0
    %v705 = vsel %vm393, %v645, 0
    %v708 = vsel %vm393, %v646, 0
    %v711 = vsel %vm393, %v647, 0
    %v714 = vsel %vm393, %v648, 0
    %v717 = vsel %vm393, %v649, 0
    %v720 = vsel %vm393, %v650, 0
    %722 = vmatprep.subr.bf16.mxu0 0
    %723 = vmatpush1.bf16.msra.mxu0 0
    %724 = vmatprep.subr.bf16.mxu0 0
    %725 = vmatpush1.bf16.msra.mxu0 0
    %726 = vmatprep.subr.bf16.mxu0 0
    %727 = vmatpush1.bf16.msra.mxu0 0
    %728 = vmatprep.subr.bf16.mxu0 0
    %729 = vmatpush1.bf16.msra.mxu0 0
    %730 = vmatprep.subr.bf16.mxu0 0
    %731 = vmatpush1.bf16.msra.mxu0 0
    %732 = vmatprep.subr.bf16.mxu0 0
    %733 = vmatpush1.bf16.msra.mxu0 0
    %734 = vmatprep.subr.bf16.mxu0 0
    %735 = vmatpush1.bf16.msra.mxu0 %v671
    %736 = vmatprep.subr.bf16.mxu0 0
    %737 = vmatpush1.bf16.msra.mxu0 %v670
    %738 = vmatprep.subr.bf16.mxu0 0
    %739 = vmatpush2.bf16.msra.mxu0 0
    %740 = vmatprep.subr.bf16.mxu0 0
    %741 = vmatpush2.bf16.msra.mxu0 0
    %742 = vmatprep.subr.bf16.mxu0 0
    %743 = vmatpush2.bf16.msra.mxu0 0
    %744 = vmatprep.subr.bf16.mxu0 0
    %745 = vmatpush2.bf16.msra.mxu0 0
    %746 = vmatprep.subr.bf16.mxu0 0
    %747 = vmatpush2.bf16.msra.mxu0 0
    %748 = vmatprep.subr.bf16.mxu0 0
    %749 = vmatpush2.bf16.msra.mxu0 0
    %750 = vmatprep.subr.bf16.mxu0 0
    %751 = vmatpush2.bf16.msra.mxu0 0
    %752 = vmatprep.subr.bf16.mxu0 0
    %753 = vmatpush2.bf16.msra.mxu0 0
    %754 = vmatprep.mubr.bf16.mxu0 0
    %755 = vmatmul.mubr.bf16.gmra.mxu0 %v675
    %v756 = vpop.f32.mrf.mxu0
    %v757 = vadd.f32 %v660, %v756
    %v758 = vpop.f32.mrf.mxu0
    %v759 = vpop.f32.mrf.mxu0
    %v760 = vadd.f32 %v660, %v759
    %v761 = vpop.f32.mrf.mxu0
    %762 = vmatprep.mubr.bf16.mxu0 0
    %763 = vmatmul.mubr.bf16.gmra.mxu0 %v678
    %v764 = vpop.f32.mrf.mxu0
    %v765 = vadd.f32 %v660, %v764
    %v766 = vpop.f32.mrf.mxu0
    %v767 = vpop.f32.mrf.mxu0
    %v768 = vadd.f32 %v660, %v767
    %v769 = vpop.f32.mrf.mxu0
    %770 = vmatprep.mubr.bf16.mxu0 0
    %771 = vmatmul.mubr.bf16.gmra.mxu0 %v681
    %v772 = vpop.f32.mrf.mxu0
    %v773 = vadd.f32 %v660, %v772
    %v774 = vpop.f32.mrf.mxu0
    %v775 = vpop.f32.mrf.mxu0
    %v776 = vadd.f32 %v660, %v775
    %v777 = vpop.f32.mrf.mxu0
    %778 = vmatprep.mubr.bf16.mxu0 0
    %779 = vmatmul.mubr.bf16.gmra.mxu0 %v684
    %v780 = vpop.f32.mrf.mxu0
    %v781 = vadd.f32 %v660, %v780
    %v782 = vpop.f32.mrf.mxu0
    %v783 = vpop.f32.mrf.mxu0
    %v784 = vadd.f32 %v660, %v783
    %v785 = vpop.f32.mrf.mxu0
    %786 = vmatprep.mubr.bf16.mxu0 0
    %787 = vmatmul.mubr.bf16.gmra.mxu0 %v687
    %v788 = vpop.f32.mrf.mxu0
    %v789 = vadd.f32 %v660, %v788
    %v790 = vpop.f32.mrf.mxu0
    %v791 = vpop.f32.mrf.mxu0
    %v792 = vadd.f32 %v660, %v791
    %v793 = vpop.f32.mrf.mxu0
    %794 = vmatprep.mubr.bf16.mxu0 0
    %795 = vmatmul.mubr.bf16.gmra.mxu0 %v690
    %v796 = vpop.f32.mrf.mxu0
    %v797 = vadd.f32 %v660, %v796
    %v798 = vpop.f32.mrf.mxu0
    %v799 = vpop.f32.mrf.mxu0
    %v800 = vadd.f32 %v660, %v799
    %v801 = vpop.f32.mrf.mxu0
    %802 = vmatprep.mubr.bf16.mxu0 0
    %803 = vmatmul.mubr.bf16.gmra.mxu0 %v693
    %v804 = vpop.f32.mrf.mxu0
    %v805 = vadd.f32 %v660, %v804
    %v806 = vpop.f32.mrf.mxu0
    %v807 = vpop.f32.mrf.mxu0
    %v808 = vadd.f32 %v660, %v807
    %v809 = vpop.f32.mrf.mxu0
    %810 = vmatprep.mubr.bf16.mxu0 0
    %811 = vmatmul.mubr.bf16.gmra.mxu0 %v696
    %v812 = vpop.f32.mrf.mxu0
    %v813 = vadd.f32 %v660, %v812
    %v814 = vpop.f32.mrf.mxu0
    %v815 = vpop.f32.mrf.mxu0
    %v816 = vadd.f32 %v660, %v815
    %v817 = vpop.f32.mrf.mxu0
    %818 = vmatprep.mubr.bf16.mxu0 0
    %819 = vmatmul.mubr.bf16.gmra.mxu0 %v699
    %v820 = vpop.f32.mrf.mxu0
    %v821 = vadd.f32 %v660, %v820
    %v822 = vpop.f32.mrf.mxu0
    %v823 = vpop.f32.mrf.mxu0
    %v824 = vadd.f32 %v660, %v823
    %v825 = vpop.f32.mrf.mxu0
    %826 = vmatprep.mubr.bf16.mxu0 0
    %827 = vmatmul.mubr.bf16.gmra.mxu0 %v702
    %v828 = vpop.f32.mrf.mxu0
    %v829 = vadd.f32 %v660, %v828
    %v830 = vpop.f32.mrf.mxu0
    %v831 = vpop.f32.mrf.mxu0
    %v832 = vadd.f32 %v660, %v831
    %v833 = vpop.f32.mrf.mxu0
    %834 = vmatprep.mubr.bf16.mxu0 0
    %835 = vmatmul.mubr.bf16.gmra.mxu0 %v705
    %v836 = vpop.f32.mrf.mxu0
    %v837 = vadd.f32 %v660, %v836
    %v838 = vpop.f32.mrf.mxu0
    %v839 = vpop.f32.mrf.mxu0
    %v840 = vadd.f32 %v660, %v839
    %v841 = vpop.f32.mrf.mxu0
    %842 = vmatprep.mubr.bf16.mxu0 0
    %843 = vmatmul.mubr.bf16.gmra.mxu0 %v708
    %v844 = vpop.f32.mrf.mxu0
    %v845 = vadd.f32 %v660, %v844
    %v846 = vpop.f32.mrf.mxu0
    %v847 = vpop.f32.mrf.mxu0
    %v848 = vadd.f32 %v660, %v847
    %v849 = vpop.f32.mrf.mxu0
    %850 = vmatprep.mubr.bf16.mxu0 0
    %851 = vmatmul.mubr.bf16.gmra.mxu0 %v711
    %v852 = vpop.f32.mrf.mxu0
    %v853 = vadd.f32 %v660, %v852
    %v854 = vpop.f32.mrf.mxu0
    %v855 = vpop.f32.mrf.mxu0
    %v856 = vadd.f32 %v660, %v855
    %v857 = vpop.f32.mrf.mxu0
    %858 = vmatprep.mubr.bf16.mxu0 0
    %859 = vmatmul.mubr.bf16.gmra.mxu0 %v714
    %v860 = vpop.f32.mrf.mxu0
    %v861 = vadd.f32 %v660, %v860
    %v862 = vpop.f32.mrf.mxu0
    %v863 = vpop.f32.mrf.mxu0
    %v864 = vadd.f32 %v660, %v863
    %v865 = vpop.f32.mrf.mxu0
    %866 = vmatprep.mubr.bf16.mxu0 0
    %867 = vmatmul.mubr.bf16.gmra.mxu0 %v717
    %v868 = vpop.f32.mrf.mxu0
    %v869 = vadd.f32 %v660, %v868
    %v870 = vpop.f32.mrf.mxu0
    %v871 = vpop.f32.mrf.mxu0
    %v872 = vadd.f32 %v660, %v871
    %v873 = vpop.f32.mrf.mxu0
    %874 = vmatprep.mubr.bf16.mxu0 0
    %875 = vmatmul.mubr.bf16.gmra.mxu0 %v720
    %v876 = vpop.f32.mrf.mxu0
    %v877 = vadd.f32 %v660, %v876
    %v878 = vpop.f32.mrf.mxu0
    %v879 = vpop.f32.mrf.mxu0
    %v880 = vadd.f32 %v660, %v879
    %v881 = vpop.f32.mrf.mxu0
    %882 = vdwg.mxu0
    %vm883 = vcmask 39936
    %884 = vst.msk [vmem:[#allocation7] sm:$0xff] %vm883, %v757
    %885 = vst.msk [vmem:[#allocation7 + $0x8] sm:$0xff] %vm883, %v760
    %886 = vst.msk [vmem:[#allocation7 + $0x10] sm:$0xff] %vm883, %v765
    %887 = vst.msk [vmem:[#allocation7 + $0x18] sm:$0xff] %vm883, %v768
    %888 = vst.msk [vmem:[#allocation7 + $0x20] sm:$0xff] %vm883, %v773
    %889 = vst.msk [vmem:[#allocation7 + $0x28] sm:$0xff] %vm883, %v776
    %890 = vst.msk [vmem:[#allocation7 + $0x30] sm:$0xff] %vm883, %v781
    %891 = vst.msk [vmem:[#allocation7 + $0x38] sm:$0xff] %vm883, %v784
    %892 = vst.msk [vmem:[#allocation7 + $0x40] sm:$0xff] %vm883, %v789
    %893 = vst.msk [vmem:[#allocation7 + $0x48] sm:$0xff] %vm883, %v792
    %894 = vst.msk [vmem:[#allocation7 + $0x50] sm:$0xff] %vm883, %v797
    %895 = vst.msk [vmem:[#allocation7 + $0x58] sm:$0xff] %vm883, %v800
    %896 = vst.msk [vmem:[#allocation7 + $0x60] sm:$0xff] %vm883, %v805
    %897 = vst.msk [vmem:[#allocation7 + $0x68] sm:$0xff] %vm883, %v808
    %898 = vst.msk [vmem:[#allocation7 + $0x70] sm:$0xff] %vm883, %v813
    %899 = vst.msk [vmem:[#allocation7 + $0x78] sm:$0xff] %vm883, %v816
    %900 = vst.msk [vmem:[#allocation7 + $0x80] sm:$0xff] %vm883, %v821
    %901 = vst.msk [vmem:[#allocation7 + $0x88] sm:$0xff] %vm883, %v824
    %902 = vst.msk [vmem:[#allocation7 + $0x90] sm:$0xff] %vm883, %v829
    %903 = vst.msk [vmem:[#allocation7 + $0x98] sm:$0xff] %vm883, %v832
    %904 = vst.msk [vmem:[#allocation7 + $0xa0] sm:$0xff] %vm883, %v837
    %905 = vst.msk [vmem:[#allocation7 + $0xa8] sm:$0xff] %vm883, %v840
    %906 = vst.msk [vmem:[#allocation7 + $0xb0] sm:$0xff] %vm883, %v845
    %907 = vst.msk [vmem:[#allocation7 + $0xb8] sm:$0xff] %vm883, %v848
    %908 = vst.msk [vmem:[#allocation7 + $0xc0] sm:$0xff] %vm883, %v853
    %909 = vst.msk [vmem:[#allocation7 + $0xc8] sm:$0xff] %vm883, %v856
    %910 = vst.msk [vmem:[#allocation7 + $0xd0] sm:$0xff] %vm883, %v861
    %911 = vst.msk [vmem:[#allocation7 + $0xd8] sm:$0xff] %vm883, %v864
    %912 = vst.msk [vmem:[#allocation7 + $0xe0] sm:$0xff] %vm883, %v869
    %913 = vst.msk [vmem:[#allocation7 + $0xe8] sm:$0xff] %vm883, %v872
    %914 = vst.msk [vmem:[#allocation7 + $0xf0] sm:$0xff] %vm883, %v877
    %915 = vst.msk [vmem:[#allocation7 + $0xf8] sm:$0xff] %vm883, %v880
    // Predicated region
    $region38: #{tpu_custom_call.1} parent=1 // pred_check
      _
    $region39: #{tpu_custom_call.1} parent=1 // pred_check_branch
      %917 = sbr.rel (0) target = $region41
    $region40: #{tpu_custom_call.1} parent=1 // pred_region
      %s919 = ssub.s32 4096, 128
      %920 = vsyncadd [#allocation4], %s919
      %s921 = sshll.u32 [#allocation7], 4
      %s922 = int_to_ptr.vmem [resolvable:$true] %s921
      %927 = dma.vmem_to_hbm [thread:$0]  %s922, 128, %s7, [#allocation4], 128, 128, 8
    $region41: #{tpu_custom_call.1} parent=1 // pred_fallthru
      _
    // Predicated region
    $region42: #{tpu_custom_call.1} parent=1 // pred_check
      _
    $region43: #{tpu_custom_call.1} parent=1 // pred_check_branch
      %929 = sbr.rel (0) target = $region45
    $region44: #{tpu_custom_call.1} parent=1 // pred_region
      %930 = dma.done [#allocation4], 4096
    $region45: #{tpu_custom_call.1} parent=1 // pred_fallthru
      _
    %931 = vsyncpa [#allocation3], 1
    %932 = vsyncpa [#allocation6], 1
    %933 = vsyncpa [#allocation4], 1

</llo_original>
